<compile_context>
chip_gen: v7x
topology: tpu7x:2x2x1
jax: 0.10.0
libtpu: 0.0.40
codegen_flags: <defaults>
</compile_context>

<pallas_src>
import functools
import math

import jax
import jax.numpy as jnp
from jax import lax
from jax.experimental import pallas as pl
from jax.experimental.pallas import tpu as pltpu


def _attention_kernel(x_ref, wqkv_ref, wproj_ref, bproj_ref, out_ref, ctx_ref,
                      *, num_heads, head_dim, scale):
    """One batch element of MHSA.

    x_ref:     (1, N, C)      bf16 activation block
    wqkv_ref:  (H, C, 3*hd)   bf16 fused q|k|v projection weights (resident)
    wproj_ref: (C, C)         bf16 output-projection weight, already transposed
                              so out = ctx @ wproj_ref (resident)
    bproj_ref: (1, C)         f32 output-projection bias (resident)
    out_ref:   (1, N, C)      output block
    ctx_ref:   (N, C)         bf16 scratch holding all heads' attention outputs
    """
    H, hd = num_heads, head_dim
    x = x_ref[0]                                                    # (N, C) bf16

    # Static loop over heads: weights are VMEM-resident, all slices static.
    for h in range(H):
        # Fused q/k/v projection for this head: one K=C matmul, 3*hd lanes out.
        qkv = jnp.dot(x, wqkv_ref[h],
                      preferred_element_type=jnp.float32)           # (N, 3*hd) f32
        q = qkv[:, 0 * hd:1 * hd] * scale                           # (N, hd) f32
        k = qkv[:, 1 * hd:2 * hd]                                   # (N, hd) f32
        v = qkv[:, 2 * hd:3 * hd]                                   # (N, hd) f32

        # Scores: contract on hd for both operands (no explicit k.T transpose).
        s = lax.dot_general(
            q.astype(jnp.bfloat16), k.astype(jnp.bfloat16),
            dimension_numbers=(((1,), (1,)), ((), ())),
            preferred_element_type=jnp.float32)                     # (N, N) f32

        # Numerically stable softmax; normalization deferred past the p@v matmul.
        m = jnp.max(s, axis=-1, keepdims=True)
        p = jnp.exp(s - m)
        denom = jnp.sum(p, axis=-1, keepdims=True)                  # (N, 1)

        o = jnp.dot(p.astype(jnp.bfloat16), v.astype(jnp.bfloat16),
                    preferred_element_type=jnp.float32)             # (N, hd) f32
        o = o * pl.reciprocal(denom, approx=False)                  # exact, tiny

        # Static column slice: head h occupies lanes [h*hd, (h+1)*hd).
        ctx_ref[:, h * hd:(h + 1) * hd] = o.astype(ctx_ref.dtype)

    # Single K=C output projection over all heads at once, plus bias.
    out = jnp.dot(ctx_ref[...], wproj_ref[...],
                  preferred_element_type=jnp.float32)               # (N, C) f32
    out_ref[0] = (out + bproj_ref[...]).astype(out_ref.dtype)


def attention_forward(x, wqkv, wproj, bproj, *, num_heads, scale):
    """Fused MHSA forward.

    x:     (B, N, C) f32
    wqkv:  (3C, C)  PyTorch nn.Linear weight layout (y = x @ W.T), qkv_bias=False
    wproj: (C, C)   PyTorch nn.Linear weight layout
    bproj: (C,)     output-projection bias
    """
    B, N, C = x.shape
    H = num_heads
    assert C % H == 0, "C must be divisible by num_heads"
    hd = C // H

    # ---- host-side, one-time re-layout / casts -----------------------------
    # (3C, C) -> W.T (C, 3C) -> (C, 3, H, hd) -> (H, C, 3*hd): per head, the
    # q|k|v columns are concatenated on the lane axis.
    wqkv_h = jnp.transpose(wqkv.T.reshape(C, 3, H, hd), (2, 0, 1, 3))
    wqkv_h = wqkv_h.reshape(H, C, 3 * hd).astype(jnp.bfloat16)

    wproj_t = wproj.T.astype(jnp.bfloat16)                     # (C, C), out = ctx @ W.T
    bproj_2d = bproj.reshape(1, C).astype(jnp.float32)
    x_bf16 = x.astype(jnp.bfloat16)

    cost = pl.CostEstimate(
        flops=int(B * (8 * N * C * C + 4 * N * N * C)),
        transcendentals=int(B * H * N * N),
        bytes_accessed=int(B * N * C * 2 + B * N * C * 4
                           + H * C * 3 * hd * 2 + C * C * 2 + C * 4),
    )

    kernel = functools.partial(_attention_kernel,
                               num_heads=H, head_dim=hd, scale=float(scale))

    return pl.pallas_call(
        kernel,
        out_shape=jax.ShapeDtypeStruct((B, N, C), x.dtype),
        grid_spec=pltpu.PrefetchScalarGridSpec(
            num_scalar_prefetch=0,
            grid=(B,),
            in_specs=[
                pl.BlockSpec((1, N, C), lambda b: (b, 0, 0)),       # x (per batch)
                pl.BlockSpec((H, C, 3 * hd), lambda b: (0, 0, 0)),  # wqkv (resident)
                pl.BlockSpec((C, C), lambda b: (0, 0)),             # wproj.T (resident)
                pl.BlockSpec((1, C), lambda b: (0, 0)),             # bias (resident)
            ],
            out_specs=pl.BlockSpec((1, N, C), lambda b: (b, 0, 0)),
            scratch_shapes=[pltpu.VMEM((N, C), jnp.bfloat16)],      # per-head ctx
        ),
        compiler_params=pltpu.CompilerParams(
            dimension_semantics=("parallel",)),
        cost_estimate=cost,
    )(x_bf16, wqkv_h, wproj_t, bproj_2d)


def reference_attention(x, wqkv, wproj, bproj, *, num_heads, scale):
    """Pure-JAX f32 reference mirroring the PyTorch forward exactly."""
    B, N, C = x.shape
    hd = C // num_heads
    qkv = x @ wqkv.T                                          # (B, N, 3C)
    qkv = qkv.reshape(B, N, 3, num_heads, hd).transpose(2, 0, 3, 1, 4)
    q, k, v = qkv[0], qkv[1], qkv[2]                          # (B, H, N, hd)
    attn = jnp.einsum("bhnd,bhmd->bhnm", q, k) * scale
    attn = jax.nn.softmax(attn, axis=-1)
    out = jnp.einsum("bhnm,bhmd->bhnd", attn, v)              # (B, H, N, hd)
    out = out.transpose(0, 2, 1, 3).reshape(B, N, C)
    return out @ wproj.T + bproj


if __name__ == "__main__":
    # Small, module-consistent shapes.
    B, N, C = 2, 8, 32
    num_heads = 4
    head_dim = C // num_heads
    scale = head_dim ** (-0.5)   # qk_scale=None -> head_dim ** -0.5

    key = jax.random.PRNGKey(0)
    kx, kqkv, kproj, kb = jax.random.split(key, 4)

    x = jax.random.normal(kx, (B, N, C), dtype=jnp.float32)

    # Deterministic synthetic parameters (qkv_bias=False -> no qkv bias).
    # PyTorch Linear computes y = x @ W^T; weights kept in PyTorch layout here.
    wqkv = jax.random.normal(kqkv, (3 * C, C), dtype=jnp.float32) * (1.0 / math.sqrt(C))
    wproj = jax.random.normal(kproj, (C, C), dtype=jnp.float32) * (1.0 / math.sqrt(C))
    bproj = jax.random.normal(kb, (C,), dtype=jnp.float32) * 0.01

    # attn_drop / proj_drop are 0.0 -> dropout is identity (eval semantics).
    out = attention_forward(x, wqkv, wproj, bproj,
                            num_heads=num_heads, scale=scale)
    out = jax.block_until_ready(out)

    ref = reference_attention(x, wqkv, wproj, bproj,
                              num_heads=num_heads, scale=scale)
    # Tolerance loosened vs pure-f32: MXU operands (and x) are bf16 with f32
    # accumulation, which is the intended precision trade-off.
    assert jnp.allclose(out, ref, atol=5e-2, rtol=5e-2), "mismatch vs reference"

    print("KERNEL_OK")
</pallas_src>

<mosaic_0001>
module attributes {stable_mosaic.version = 11 : i64} {
  func.func @_attention_kernel(%arg0: i32, %arg1: memref<1x8x32xbf16, #tpu.memory_space<vmem>>, %arg2: memref<4x32x24xbf16, #tpu.memory_space<vmem>>, %arg3: memref<32x32xbf16, #tpu.memory_space<vmem>>, %arg4: memref<1x32xf32, #tpu.memory_space<vmem>>, %arg5: memref<1x8x32xf32, #tpu.memory_space<vmem>>, %arg6: memref<8x32xbf16, #tpu.memory_space<vmem>>) attributes {dimension_semantics = [#tpu.dimension_semantics<parallel>], iteration_bounds = array<i64: 2>, scalar_prefetch = 0 : i64, scratch_operands = 1 : i64, tpu.core_type = #tpu.core_type<tc>, window_params = [{transform_indices = @transform_0, window_bounds = array<i64: 1, 8, 32>}, {pipeline_mode = #tpu.pipeline_mode<synchronous>, transform_indices = @transform_1, window_bounds = array<i64: 4, 32, 24>}, {pipeline_mode = #tpu.pipeline_mode<synchronous>, transform_indices = @transform_2, window_bounds = array<i64: 32, 32>}, {pipeline_mode = #tpu.pipeline_mode<synchronous>, transform_indices = @transform_3, window_bounds = array<i64: 1, 32>}, {transform_indices = @transform_4, window_bounds = array<i64: 1, 8, 32>}]} {
    %c0 = arith.constant 0 : index
    %c0_0 = arith.constant 0 : index
    %c0_1 = arith.constant 0 : index
    %0 = vector.load %arg1[%c0, %c0_0, %c0_1] : memref<1x8x32xbf16, #tpu.memory_space<vmem>>, vector<1x8x32xbf16>
    %1 = vector.shape_cast %0 : vector<1x8x32xbf16> to vector<8x32xbf16>
    %c0_2 = arith.constant 0 : index
    %c0_3 = arith.constant 0 : index
    %c0_4 = arith.constant 0 : index
    %2 = vector.load %arg2[%c0_2, %c0_3, %c0_4] : memref<4x32x24xbf16, #tpu.memory_space<vmem>>, vector<1x32x24xbf16>
    %3 = vector.shape_cast %2 : vector<1x32x24xbf16> to vector<32x24xbf16>
    %cst = arith.constant dense<0.000000e+00> : vector<8x24xf32>
    %4 = tpu.matmul %1, %3, %cst {dimension_numbers = #tpu.dot_dimension_numbers<[1], [0], [0], [1], [0, 0, 1, 1], [], []>} : vector<8x32xbf16>, vector<32x24xbf16>, vector<8x24xf32> -> vector<8x24xf32>
    %5 = vector.extract_strided_slice %4 {offsets = [0, 0], sizes = [8, 8], strides = [1, 1]} : vector<8x24xf32> to vector<8x8xf32>
    %cst_5 = arith.constant 0.353553385 : f32
    %6 = vector.broadcast %cst_5 : f32 to vector<8x8xf32>
    %7 = arith.mulf %5, %6 : vector<8x8xf32>
    %8 = vector.extract_strided_slice %4 {offsets = [0, 8], sizes = [8, 8], strides = [1, 1]} : vector<8x24xf32> to vector<8x8xf32>
    %9 = vector.extract_strided_slice %4 {offsets = [0, 16], sizes = [8, 8], strides = [1, 1]} : vector<8x24xf32> to vector<8x8xf32>
    %10 = arith.truncf %7 : vector<8x8xf32> to vector<8x8xbf16>
    %11 = arith.truncf %8 : vector<8x8xf32> to vector<8x8xbf16>
    %cst_6 = arith.constant dense<0.000000e+00> : vector<8x8xf32>
    %12 = tpu.matmul %10, %11, %cst_6 {dimension_numbers = #tpu.dot_dimension_numbers<[1], [1], [0], [0], [0, 0, 1, 0], [], []>} : vector<8x8xbf16>, vector<8x8xbf16>, vector<8x8xf32> -> vector<8x8xf32>
    %cst_7 = arith.constant dense<0xFF800000> : vector<8xf32>
    %13 = vector.multi_reduction <maximumf>, %12, %cst_7 [1] : vector<8x8xf32> to vector<8xf32>
    %14 = vector.shape_cast %13 : vector<8xf32> to vector<8x1xf32>
    %15 = vector.broadcast %14 : vector<8x1xf32> to vector<8x8xf32>
    %16 = arith.subf %12, %15 : vector<8x8xf32>
    %17 = math.exp %16 : vector<8x8xf32>
    %cst_8 = arith.constant dense<0.000000e+00> : vector<8xf32>
    %18 = vector.multi_reduction <add>, %17, %cst_8 [1] : vector<8x8xf32> to vector<8xf32>
    %19 = vector.shape_cast %18 : vector<8xf32> to vector<8x1xf32>
    %20 = arith.truncf %17 : vector<8x8xf32> to vector<8x8xbf16>
    %21 = arith.truncf %9 : vector<8x8xf32> to vector<8x8xbf16>
    %cst_9 = arith.constant dense<0.000000e+00> : vector<8x8xf32>
    %22 = tpu.matmul %20, %21, %cst_9 {dimension_numbers = #tpu.dot_dimension_numbers<[1], [0], [0], [1], [0, 0, 1, 1], [], []>} : vector<8x8xbf16>, vector<8x8xbf16>, vector<8x8xf32> -> vector<8x8xf32>
    %23 = tpu.reciprocal %19 : vector<8x1xf32> -> vector<8x1xf32>
    %24 = vector.broadcast %23 : vector<8x1xf32> to vector<8x8xf32>
    %25 = arith.mulf %22, %24 : vector<8x8xf32>
    %26 = arith.truncf %25 : vector<8x8xf32> to vector<8x8xbf16>
    %c0_10 = arith.constant 0 : index
    %c0_11 = arith.constant 0 : index
    %27 = vector.load %arg6[%c0_10, %c0_11] : memref<8x32xbf16, #tpu.memory_space<vmem>>, vector<8x8xbf16>
    tpu.vector_store %arg6[%c0_10, %c0_11], %26 {strides = array<i32>} : memref<8x32xbf16, #tpu.memory_space<vmem>>, vector<8x8xbf16>,
    %c1 = arith.constant 1 : index
    %c0_12 = arith.constant 0 : index
    %c0_13 = arith.constant 0 : index
    %28 = vector.load %arg2[%c1, %c0_12, %c0_13] : memref<4x32x24xbf16, #tpu.memory_space<vmem>>, vector<1x32x24xbf16>
    %29 = vector.shape_cast %28 : vector<1x32x24xbf16> to vector<32x24xbf16>
    %cst_14 = arith.constant dense<0.000000e+00> : vector<8x24xf32>
    %30 = tpu.matmul %1, %29, %cst_14 {dimension_numbers = #tpu.dot_dimension_numbers<[1], [0], [0], [1], [0, 0, 1, 1], [], []>} : vector<8x32xbf16>, vector<32x24xbf16>, vector<8x24xf32> -> vector<8x24xf32>
    %31 = vector.extract_strided_slice %30 {offsets = [0, 0], sizes = [8, 8], strides = [1, 1]} : vector<8x24xf32> to vector<8x8xf32>
    %cst_15 = arith.constant 0.353553385 : f32
    %32 = vector.broadcast %cst_15 : f32 to vector<8x8xf32>
    %33 = arith.mulf %31, %32 : vector<8x8xf32>
    %34 = vector.extract_strided_slice %30 {offsets = [0, 8], sizes = [8, 8], strides = [1, 1]} : vector<8x24xf32> to vector<8x8xf32>
    %35 = vector.extract_strided_slice %30 {offsets = [0, 16], sizes = [8, 8], strides = [1, 1]} : vector<8x24xf32> to vector<8x8xf32>
    %36 = arith.truncf %33 : vector<8x8xf32> to vector<8x8xbf16>
    %37 = arith.truncf %34 : vector<8x8xf32> to vector<8x8xbf16>
    %cst_16 = arith.constant dense<0.000000e+00> : vector<8x8xf32>
    %38 = tpu.matmul %36, %37, %cst_16 {dimension_numbers = #tpu.dot_dimension_numbers<[1], [1], [0], [0], [0, 0, 1, 0], [], []>} : vector<8x8xbf16>, vector<8x8xbf16>, vector<8x8xf32> -> vector<8x8xf32>
    %cst_17 = arith.constant dense<0xFF800000> : vector<8xf32>
    %39 = vector.multi_reduction <maximumf>, %38, %cst_17 [1] : vector<8x8xf32> to vector<8xf32>
    %40 = vector.shape_cast %39 : vector<8xf32> to vector<8x1xf32>
    %41 = vector.broadcast %40 : vector<8x1xf32> to vector<8x8xf32>
    %42 = arith.subf %38, %41 : vector<8x8xf32>
    %43 = math.exp %42 : vector<8x8xf32>
    %cst_18 = arith.constant dense<0.000000e+00> : vector<8xf32>
    %44 = vector.multi_reduction <add>, %43, %cst_18 [1] : vector<8x8xf32> to vector<8xf32>
    %45 = vector.shape_cast %44 : vector<8xf32> to vector<8x1xf32>
    %46 = arith.truncf %43 : vector<8x8xf32> to vector<8x8xbf16>
    %47 = arith.truncf %35 : vector<8x8xf32> to vector<8x8xbf16>
    %cst_19 = arith.constant dense<0.000000e+00> : vector<8x8xf32>
    %48 = tpu.matmul %46, %47, %cst_19 {dimension_numbers = #tpu.dot_dimension_numbers<[1], [0], [0], [1], [0, 0, 1, 1], [], []>} : vector<8x8xbf16>, vector<8x8xbf16>, vector<8x8xf32> -> vector<8x8xf32>
    %49 = tpu.reciprocal %45 : vector<8x1xf32> -> vector<8x1xf32>
    %50 = vector.broadcast %49 : vector<8x1xf32> to vector<8x8xf32>
    %51 = arith.mulf %48, %50 : vector<8x8xf32>
    %52 = arith.truncf %51 : vector<8x8xf32> to vector<8x8xbf16>
    %c0_20 = arith.constant 0 : index
    %c8 = arith.constant 8 : index
    %53 = vector.load %arg6[%c0_20, %c8] : memref<8x32xbf16, #tpu.memory_space<vmem>>, vector<8x8xbf16>
    tpu.vector_store %arg6[%c0_20, %c8], %52 {strides = array<i32>} : memref<8x32xbf16, #tpu.memory_space<vmem>>, vector<8x8xbf16>,
    %c2 = arith.constant 2 : index
    %c0_21 = arith.constant 0 : index
    %c0_22 = arith.constant 0 : index
    %54 = vector.load %arg2[%c2, %c0_21, %c0_22] : memref<4x32x24xbf16, #tpu.memory_space<vmem>>, vector<1x32x24xbf16>
    %55 = vector.shape_cast %54 : vector<1x32x24xbf16> to vector<32x24xbf16>
    %cst_23 = arith.constant dense<0.000000e+00> : vector<8x24xf32>
    %56 = tpu.matmul %1, %55, %cst_23 {dimension_numbers = #tpu.dot_dimension_numbers<[1], [0], [0], [1], [0, 0, 1, 1], [], []>} : vector<8x32xbf16>, vector<32x24xbf16>, vector<8x24xf32> -> vector<8x24xf32>
    %57 = vector.extract_strided_slice %56 {offsets = [0, 0], sizes = [8, 8], strides = [1, 1]} : vector<8x24xf32> to vector<8x8xf32>
    %cst_24 = arith.constant 0.353553385 : f32
    %58 = vector.broadcast %cst_24 : f32 to vector<8x8xf32>
    %59 = arith.mulf %57, %58 : vector<8x8xf32>
    %60 = vector.extract_strided_slice %56 {offsets = [0, 8], sizes = [8, 8], strides = [1, 1]} : vector<8x24xf32> to vector<8x8xf32>
    %61 = vector.extract_strided_slice %56 {offsets = [0, 16], sizes = [8, 8], strides = [1, 1]} : vector<8x24xf32> to vector<8x8xf32>
    %62 = arith.truncf %59 : vector<8x8xf32> to vector<8x8xbf16>
    %63 = arith.truncf %60 : vector<8x8xf32> to vector<8x8xbf16>
    %cst_25 = arith.constant dense<0.000000e+00> : vector<8x8xf32>
    %64 = tpu.matmul %62, %63, %cst_25 {dimension_numbers = #tpu.dot_dimension_numbers<[1], [1], [0], [0], [0, 0, 1, 0], [], []>} : vector<8x8xbf16>, vector<8x8xbf16>, vector<8x8xf32> -> vector<8x8xf32>
    %cst_26 = arith.constant dense<0xFF800000> : vector<8xf32>
    %65 = vector.multi_reduction <maximumf>, %64, %cst_26 [1] : vector<8x8xf32> to vector<8xf32>
    %66 = vector.shape_cast %65 : vector<8xf32> to vector<8x1xf32>
    %67 = vector.broadcast %66 : vector<8x1xf32> to vector<8x8xf32>
    %68 = arith.subf %64, %67 : vector<8x8xf32>
    %69 = math.exp %68 : vector<8x8xf32>
    %cst_27 = arith.constant dense<0.000000e+00> : vector<8xf32>
    %70 = vector.multi_reduction <add>, %69, %cst_27 [1] : vector<8x8xf32> to vector<8xf32>
    %71 = vector.shape_cast %70 : vector<8xf32> to vector<8x1xf32>
    %72 = arith.truncf %69 : vector<8x8xf32> to vector<8x8xbf16>
    %73 = arith.truncf %61 : vector<8x8xf32> to vector<8x8xbf16>
    %cst_28 = arith.constant dense<0.000000e+00> : vector<8x8xf32>
    %74 = tpu.matmul %72, %73, %cst_28 {dimension_numbers = #tpu.dot_dimension_numbers<[1], [0], [0], [1], [0, 0, 1, 1], [], []>} : vector<8x8xbf16>, vector<8x8xbf16>, vector<8x8xf32> -> vector<8x8xf32>
    %75 = tpu.reciprocal %71 : vector<8x1xf32> -> vector<8x1xf32>
    %76 = vector.broadcast %75 : vector<8x1xf32> to vector<8x8xf32>
    %77 = arith.mulf %74, %76 : vector<8x8xf32>
    %78 = arith.truncf %77 : vector<8x8xf32> to vector<8x8xbf16>
    %c0_29 = arith.constant 0 : index
    %c16 = arith.constant 16 : index
    %79 = vector.load %arg6[%c0_29, %c16] : memref<8x32xbf16, #tpu.memory_space<vmem>>, vector<8x8xbf16>
    tpu.vector_store %arg6[%c0_29, %c16], %78 {strides = array<i32>} : memref<8x32xbf16, #tpu.memory_space<vmem>>, vector<8x8xbf16>,
    %c3 = arith.constant 3 : index
    %c0_30 = arith.constant 0 : index
    %c0_31 = arith.constant 0 : index
    %80 = vector.load %arg2[%c3, %c0_30, %c0_31] : memref<4x32x24xbf16, #tpu.memory_space<vmem>>, vector<1x32x24xbf16>
    %81 = vector.shape_cast %80 : vector<1x32x24xbf16> to vector<32x24xbf16>
    %cst_32 = arith.constant dense<0.000000e+00> : vector<8x24xf32>
    %82 = tpu.matmul %1, %81, %cst_32 {dimension_numbers = #tpu.dot_dimension_numbers<[1], [0], [0], [1], [0, 0, 1, 1], [], []>} : vector<8x32xbf16>, vector<32x24xbf16>, vector<8x24xf32> -> vector<8x24xf32>
    %83 = vector.extract_strided_slice %82 {offsets = [0, 0], sizes = [8, 8], strides = [1, 1]} : vector<8x24xf32> to vector<8x8xf32>
    %cst_33 = arith.constant 0.353553385 : f32
    %84 = vector.broadcast %cst_33 : f32 to vector<8x8xf32>
    %85 = arith.mulf %83, %84 : vector<8x8xf32>
    %86 = vector.extract_strided_slice %82 {offsets = [0, 8], sizes = [8, 8], strides = [1, 1]} : vector<8x24xf32> to vector<8x8xf32>
    %87 = vector.extract_strided_slice %82 {offsets = [0, 16], sizes = [8, 8], strides = [1, 1]} : vector<8x24xf32> to vector<8x8xf32>
    %88 = arith.truncf %85 : vector<8x8xf32> to vector<8x8xbf16>
    %89 = arith.truncf %86 : vector<8x8xf32> to vector<8x8xbf16>
    %cst_34 = arith.constant dense<0.000000e+00> : vector<8x8xf32>
    %90 = tpu.matmul %88, %89, %cst_34 {dimension_numbers = #tpu.dot_dimension_numbers<[1], [1], [0], [0], [0, 0, 1, 0], [], []>} : vector<8x8xbf16>, vector<8x8xbf16>, vector<8x8xf32> -> vector<8x8xf32>
    %cst_35 = arith.constant dense<0xFF800000> : vector<8xf32>
    %91 = vector.multi_reduction <maximumf>, %90, %cst_35 [1] : vector<8x8xf32> to vector<8xf32>
    %92 = vector.shape_cast %91 : vector<8xf32> to vector<8x1xf32>
    %93 = vector.broadcast %92 : vector<8x1xf32> to vector<8x8xf32>
    %94 = arith.subf %90, %93 : vector<8x8xf32>
    %95 = math.exp %94 : vector<8x8xf32>
    %cst_36 = arith.constant dense<0.000000e+00> : vector<8xf32>
    %96 = vector.multi_reduction <add>, %95, %cst_36 [1] : vector<8x8xf32> to vector<8xf32>
    %97 = vector.shape_cast %96 : vector<8xf32> to vector<8x1xf32>
    %98 = arith.truncf %95 : vector<8x8xf32> to vector<8x8xbf16>
    %99 = arith.truncf %87 : vector<8x8xf32> to vector<8x8xbf16>
    %cst_37 = arith.constant dense<0.000000e+00> : vector<8x8xf32>
    %100 = tpu.matmul %98, %99, %cst_37 {dimension_numbers = #tpu.dot_dimension_numbers<[1], [0], [0], [1], [0, 0, 1, 1], [], []>} : vector<8x8xbf16>, vector<8x8xbf16>, vector<8x8xf32> -> vector<8x8xf32>
    %101 = tpu.reciprocal %97 : vector<8x1xf32> -> vector<8x1xf32>
    %102 = vector.broadcast %101 : vector<8x1xf32> to vector<8x8xf32>
    %103 = arith.mulf %100, %102 : vector<8x8xf32>
    %104 = arith.truncf %103 : vector<8x8xf32> to vector<8x8xbf16>
    %c0_38 = arith.constant 0 : index
    %c24 = arith.constant 24 : index
    %105 = vector.load %arg6[%c0_38, %c24] : memref<8x32xbf16, #tpu.memory_space<vmem>>, vector<8x8xbf16>
    tpu.vector_store %arg6[%c0_38, %c24], %104 {strides = array<i32>} : memref<8x32xbf16, #tpu.memory_space<vmem>>, vector<8x8xbf16>,
    %c0_39 = arith.constant 0 : index
    %c0_40 = arith.constant 0 : index
    %106 = vector.load %arg6[%c0_39, %c0_40] : memref<8x32xbf16, #tpu.memory_space<vmem>>, vector<8x32xbf16>
    %c0_41 = arith.constant 0 : index
    %c0_42 = arith.constant 0 : index
    %107 = vector.load %arg3[%c0_41, %c0_42] : memref<32x32xbf16, #tpu.memory_space<vmem>>, vector<32x32xbf16>
    %cst_43 = arith.constant dense<0.000000e+00> : vector<8x32xf32>
    %108 = tpu.matmul %106, %107, %cst_43 {dimension_numbers = #tpu.dot_dimension_numbers<[1], [0], [0], [1], [0, 0, 1, 1], [], []>} : vector<8x32xbf16>, vector<32x32xbf16>, vector<8x32xf32> -> vector<8x32xf32>
    %c0_44 = arith.constant 0 : index
    %c0_45 = arith.constant 0 : index
    %109 = vector.load %arg4[%c0_44, %c0_45] : memref<1x32xf32, #tpu.memory_space<vmem>>, vector<1x32xf32>
    %110 = vector.broadcast %109 : vector<1x32xf32> to vector<8x32xf32>
    %111 = arith.addf %108, %110 : vector<8x32xf32>
    %c0_46 = arith.constant 0 : index
    %c0_47 = arith.constant 0 : index
    %c0_48 = arith.constant 0 : index
    %112 = vector.load %arg5[%c0_46, %c0_47, %c0_48] : memref<1x8x32xf32, #tpu.memory_space<vmem>>, vector<1x8x32xf32>
    %113 = vector.shape_cast %112 : vector<1x8x32xf32> to vector<8x32xf32>
    %114 = vector.shape_cast %111 : vector<8x32xf32> to vector<1x8x32xf32>
    tpu.vector_store %arg5[%c0_46, %c0_47, %c0_48], %114 {strides = array<i32>} : memref<1x8x32xf32, #tpu.memory_space<vmem>>, vector<1x8x32xf32>,
    return
  }
  func.func @transform_0(%arg0: i32) -> (i32, i32, i32) {
    %c0_i32 = arith.constant 0 : i32
    %c0_i32_0 = arith.constant 0 : i32
    %c0_i32_1 = arith.constant 0 : i32
    return %arg0, %c0_i32, %c0_i32_0 : i32, i32, i32
  }
  func.func @transform_1(%arg0: i32) -> (i32, i32, i32) {
    %c0_i32 = arith.constant 0 : i32
    %c0_i32_0 = arith.constant 0 : i32
    %c0_i32_1 = arith.constant 0 : i32
    %c0_i32_2 = arith.constant 0 : i32
    return %c0_i32, %c0_i32_0, %c0_i32_1 : i32, i32, i32
  }
  func.func @transform_2(%arg0: i32) -> (i32, i32) {
    %c0_i32 = arith.constant 0 : i32
    %c0_i32_0 = arith.constant 0 : i32
    %c0_i32_1 = arith.constant 0 : i32
    return %c0_i32, %c0_i32_0 : i32, i32
  }
  func.func @transform_3(%arg0: i32) -> (i32, i32) {
    %c0_i32 = arith.constant 0 : i32
    %c0_i32_0 = arith.constant 0 : i32
    %c0_i32_1 = arith.constant 0 : i32
    return %c0_i32, %c0_i32_0 : i32, i32
  }
  func.func @transform_4(%arg0: i32) -> (i32, i32, i32) {
    %c0_i32 = arith.constant 0 : i32
    %c0_i32_0 = arith.constant 0 : i32
    %c0_i32_1 = arith.constant 0 : i32
    return %arg0, %c0_i32, %c0_i32_0 : i32, i32, i32
  }
}

</mosaic_0001>

<llo_original>
// kernel: tpu_custom_call.1
$region0: #{tpu_custom_call.1}
  #allocation0 [shape = 'u32[]', space=smem, size = 0x4, offset = 0x4, fixed_abs, tag = 'smem constant byte address 0x4 - core index']
  #allocation1 [shape = 'u32[144,128]{1,0:T(1,128)}', space=vmem, size = 0x12000, scoped, tag = 'internal scratch']
  #allocation2 [shape = 'bf16[8,32]{1,0:T(8,128)(2,1)}', space=vmem, size = 0x800, scoped, tag = 'scratch operand']
  %s0 = inlined_call_operand.vmem [shape: bf16[2,8,32], index: 0, kind: input, shape index: {}]
  %s1 = inlined_call_operand.vmem [shape: bf16[4,32,24], index: 1, kind: input, shape index: {}]
  %s2 = inlined_call_operand.vmem [shape: bf16[32,32], index: 2, kind: input, shape index: {}]
  %s3 = inlined_call_operand.vmem [shape: f32[1,32], index: 3, kind: input, shape index: {}]
  %s4 = inlined_call_operand.hbm [shape: f32[2,8,32], index: 4, kind: output, shape index: {}]
  %s5 = sld [smem:[#allocation0]]
  $region49: #{tpu_custom_call.1} parent=0
    _
  %s7 = ssub.s32 1, %s5
  %s8 = scalar_select 0, %s7, %s5
  $region1: #{tpu_custom_call.1} parent=0
    #allocation3 [shape = 'u8[8192]{0}', space=vmem, size = 0x2000, scoped, tag = 'output window, operand 0']
    #allocation4 [shape = 's32[2]{0}', space=sflag, size = 0x8, scoped, tag = 'scoped memory for tpu_custom_call.1']
    %9 = vsyncpa [#allocation4], 0
    %s10 = scalar_lea.sflag [#allocation4], 1
    %11 = vsyncpa %s10, 0
    loop: start=0, step=1, limit=4
    $region2: #{tpu_custom_call.1} parent=1 // loop_pre_header
      _
    $region3: #{tpu_custom_call.1} parent=1 // loop_header
      %s13 = sphi 0, %s17
      %p14 = scmp.ge.s32.totalorder %s13, 4
      %s23 = sphi 0, %s25
      %s26 = sphi 0, %s23
      %s27 = sphi 0, %s26
      %s43 = sphi 0, %s27
      %s47 = sphi 0, %s47
      %s49 = sphi 0, %s47
      %s50 = sphi 0, %s49
      %s64 = sphi 0, %s50
      %s68 = sphi 0, %s68
      %s70 = sphi 0, %s68
      %s71 = sphi 0, %s70
      %s85 = sphi 0, %s71
      %s89 = sphi 0, %s89
      %s91 = sphi 0, %s89
      %s92 = sphi 0, %s91
      %s106 = sphi 0, %s92
      %s112 = sphi 0, %s114
      %s115 = sphi 0, %s112
      %s116 = sphi 0, %s115
      %s132 = sphi 0, %s116
    $region4: #{tpu_custom_call.1} parent=1 // loop_header_branch
      %16 = sbr.rel (%p14) target = $region8
    $region5: #{tpu_custom_call.1} parent=1 // loop_body
      %s18 = ssub.s32 %s13, 1
      %s19 = ssub.s32 %s13, 2
      %s20 = sadd.s32 %s13, 1
      %s21 = ssub.s32 %s13, %s20
      %p22 = scmp.eq.s32.totalorder %s21, 0
      %s24 = sadd.s32 %s23, 1
      %s25 = scalar_select %p22, %s23, %s24
      %p28 = pneg %p22
      %p29 = scmp.eq.s32.totalorder %s13, 1
      %p30 = por %p28, %p29
      %p31 = scmp.ne.s32.totalorder %s23, %s26
      %p32 = scmp.eq.s32.totalorder %s13, 0
      %p33 = por %p31, %p32
      %p34 = scmp.ne.s32.totalorder %s23, %s26
      %p35 = scmp.eq.s32.totalorder %s18, 1
      %p36 = por %p34, %p35
      %p37 = scmp.ne.s32.totalorder %s26, %s27
      %p38 = scmp.eq.s32.totalorder %s18, 0
      %p39 = por %p37, %p38
      %p40 = scmp.ne.s32.totalorder %s26, %s27
      %p41 = scmp.eq.s32.totalorder %s19, 1
      %p42 = por %p40, %p41
      %p44 = scmp.ne.s32.totalorder %s27, %s43
      %p45 = scmp.eq.s32.totalorder %s19, 0
      %p46 = por %p44, %p45
      %s48 = sadd.s32 %s47, 1
      %p51 = scmp.eq.s32.totalorder %s13, 1
      %p52 = scmp.ne.s32.totalorder %s47, %s49
      %p53 = scmp.eq.s32.totalorder %s13, 0
      %p54 = por %p52, %p53
      %p55 = scmp.ne.s32.totalorder %s47, %s49
      %p56 = scmp.eq.s32.totalorder %s18, 1
      %p57 = por %p55, %p56
      %p58 = scmp.ne.s32.totalorder %s49, %s50
      %p59 = scmp.eq.s32.totalorder %s18, 0
      %p60 = por %p58, %p59
      %p61 = scmp.ne.s32.totalorder %s49, %s50
      %p62 = scmp.eq.s32.totalorder %s19, 1
      %p63 = por %p61, %p62
      %p65 = scmp.ne.s32.totalorder %s50, %s64
      %p66 = scmp.eq.s32.totalorder %s19, 0
      %p67 = por %p65, %p66
      %s69 = sadd.s32 %s68, 1
      %p72 = scmp.eq.s32.totalorder %s13, 1
      %p73 = scmp.ne.s32.totalorder %s68, %s70
      %p74 = scmp.eq.s32.totalorder %s13, 0
      %p75 = por %p73, %p74
      %p76 = scmp.ne.s32.totalorder %s68, %s70
      %p77 = scmp.eq.s32.totalorder %s18, 1
      %p78 = por %p76, %p77
      %p79 = scmp.ne.s32.totalorder %s70, %s71
      %p80 = scmp.eq.s32.totalorder %s18, 0
      %p81 = por %p79, %p80
      %p82 = scmp.ne.s32.totalorder %s70, %s71
      %p83 = scmp.eq.s32.totalorder %s19, 1
      %p84 = por %p82, %p83
      %p86 = scmp.ne.s32.totalorder %s71, %s85
      %p87 = scmp.eq.s32.totalorder %s19, 0
      %p88 = por %p86, %p87
      %s90 = sadd.s32 %s89, 1
      %p93 = scmp.eq.s32.totalorder %s13, 1
      %p94 = scmp.ne.s32.totalorder %s89, %s91
      %p95 = scmp.eq.s32.totalorder %s13, 0
      %p96 = por %p94, %p95
      %p97 = scmp.ne.s32.totalorder %s89, %s91
      %p98 = scmp.eq.s32.totalorder %s18, 1
      %p99 = por %p97, %p98
      %p100 = scmp.ne.s32.totalorder %s91, %s92
      %p101 = scmp.eq.s32.totalorder %s18, 0
      %p102 = por %p100, %p101
      %p103 = scmp.ne.s32.totalorder %s91, %s92
      %p104 = scmp.eq.s32.totalorder %s19, 1
      %p105 = por %p103, %p104
      %p107 = scmp.ne.s32.totalorder %s92, %s106
      %p108 = scmp.eq.s32.totalorder %s19, 0
      %p109 = por %p107, %p108
      %s110 = ssub.s32 %s13, %s20
      %p111 = scmp.eq.s32.totalorder %s110, 0
      %s113 = sadd.s32 %s112, 1
      %s114 = scalar_select %p111, %s112, %s113
      %p117 = pneg %p111
      %p118 = scmp.eq.s32.totalorder %s13, 1
      %p119 = por %p117, %p118
      %p120 = scmp.ne.s32.totalorder %s112, %s115
      %p121 = scmp.eq.s32.totalorder %s13, 0
      %p122 = por %p120, %p121
      %p123 = scmp.ne.s32.totalorder %s112, %s115
      %p124 = scmp.eq.s32.totalorder %s18, 1
      %p125 = por %p123, %p124
      %p126 = scmp.ne.s32.totalorder %s115, %s116
      %p127 = scmp.eq.s32.totalorder %s18, 0
      %p128 = por %p126, %p127
      %p129 = scmp.ne.s32.totalorder %s115, %s116
      %p130 = scmp.eq.s32.totalorder %s19, 1
      %p131 = por %p129, %p130
      %p133 = scmp.ne.s32.totalorder %s116, %s132
      %p134 = scmp.eq.s32.totalorder %s19, 0
      %p135 = por %p133, %p134
      %p136 = scmp.le.s32.totalorder 1, %s13
      %p137 = scmp.lt.s32.totalorder %s13, 3
      %p138 = pnand %p136, %p137
      %p139 = pneg %p138
      // Predicated region
      $region9: #{tpu_custom_call.1} parent=5 // pred_check
        _
      $region10: #{tpu_custom_call.1} parent=5 // pred_check_branch
        %141 = sbr.rel (%p138) target = $region12
      $region11: #{tpu_custom_call.1} parent=5 // pred_region
        %s142 = ssub.s32 %s13, 1
        // Predicated region
        $region13: #{tpu_custom_call.1} parent=11 // pred_check
          %p143 = pneg %p60
        $region14: #{tpu_custom_call.1} parent=11 // pred_check_branch
          %145 = sbr.rel (%p143) target = $region16
        $region15: #{tpu_custom_call.1} parent=11 // pred_region
          _
        $region16: #{tpu_custom_call.1} parent=11 // pred_fallthru
          _
        // Predicated region
        $region17: #{tpu_custom_call.1} parent=11 // pred_check
          %p146 = pneg %p81
        $region18: #{tpu_custom_call.1} parent=11 // pred_check_branch
          %148 = sbr.rel (%p146) target = $region20
        $region19: #{tpu_custom_call.1} parent=11 // pred_region
          _
        $region20: #{tpu_custom_call.1} parent=11 // pred_fallthru
          _
        // Predicated region
        $region21: #{tpu_custom_call.1} parent=11 // pred_check
          %p149 = pneg %p102
        $region22: #{tpu_custom_call.1} parent=11 // pred_check_branch
          %151 = sbr.rel (%p149) target = $region24
        $region23: #{tpu_custom_call.1} parent=11 // pred_region
          _
        $region24: #{tpu_custom_call.1} parent=11 // pred_fallthru
          _
      $region12: #{tpu_custom_call.1} parent=5 // pred_fallthru
        _
      %p152 = scmp.lt.s32.totalorder %s13, 2
      // Predicated region
      $region25: #{tpu_custom_call.1} parent=5 // pred_check
        %p153 = pneg %p152
      $region26: #{tpu_custom_call.1} parent=5 // pred_check_branch
        %155 = sbr.rel (%p153) target = $region28
      $region27: #{tpu_custom_call.1} parent=5 // pred_region
        // Predicated region
        $region29: #{tpu_custom_call.1} parent=27 // pred_check
          %p156 = pneg %p33
        $region30: #{tpu_custom_call.1} parent=27 // pred_check_branch
          %158 = sbr.rel (%p156) target = $region32
        $region31: #{tpu_custom_call.1} parent=27 // pred_region
          %p159 = scmp.lt.s32.totalorder %s13, 1
          %s160 = scalar_select %p159, %s13, 1
          %s161 = smul.addr %s160, 4
          %s162 = scalar_lea.vmem %s0, %s161
        $region32: #{tpu_custom_call.1} parent=27 // pred_fallthru
          _
      $region28: #{tpu_custom_call.1} parent=5 // pred_fallthru
        _
      %p163 = scmp.le.s32.totalorder 1, %s13
      %p164 = scmp.lt.s32.totalorder %s13, 3
      %p165 = pnand %p163, %p164
      %p166 = pneg %p165
      // Predicated region
      $region33: #{tpu_custom_call.1} parent=5 // pred_check
        _
      $region34: #{tpu_custom_call.1} parent=5 // pred_check_branch
        %168 = sbr.rel (%p165) target = $region36
      $region35: #{tpu_custom_call.1} parent=5 // pred_region
        %s169 = ssub.s32 %s13, 1
        %p170 = scmp.lt.s32.totalorder %s18, 1
        %s171 = scalar_select %p170, %s18, 1
        %s172 = smul.addr %s171, 4
        %s173 = scalar_lea.vmem %s0, %s172
        %p174 = pneg %p39
        %p175 = pneg %p36
        %p176 = pneg %p60
        %p177 = pneg %p57
        %p178 = pneg %p81
        %p179 = pneg %p78
        %p180 = pneg %p102
        %p181 = pneg %p99
        %p182 = pneg %p128
        %p183 = pneg %p125
        %s184 = sand.u32 %s115, 1
        %s185 = scalar_lea.sflag [#allocation4], %s184
        %s186 = sand.u32 %s115, 1
        %s187 = smul.addr %s186, 8
        %s188 = scalar_lea.vmem [#allocation3], %s187
        %p189 = scmp.lt.s32.totalorder %s18, 1
        %s190 = scalar_select %p189, %s18, 1
        %s191 = smul.addr %s190, 4
        %s192 = scalar_lea.vmem %s0, %s191
        %v194 = vld [vmem:[%s192] sm:$0xf]
        %v195 = vld [vmem:[%s1] sm:$0xf]
        %v196 = vld [vmem:[%s1 + $0x4] sm:$0xf]
        %v197 = vld [vmem:[%s1 + $0x8] sm:$0xf]
        %v198 = vld [vmem:[%s1 + $0xc] sm:$0xf]
        %v203 = vunpack.c.l.b16 %v195
        %v204 = vunpack.c.l.b16 %v196
        %v205 = vunpack.c.l.b16 %v197
        %v206 = vunpack.c.l.b16 %v198
        %v207 = vpack.c.b16 %v204, %v203
        %v208 = vpack.c.b16 %v206, %v205
        %vm211 = vcmask 261120
        %v213 = vsel %vm211, %v194, 0
        %215 = vmatprep.subr.bf16.mxu0 0
        %216 = vmatpush1.bf16.msra.mxu0 %v207
        %217 = vmatprep.subr.bf16.mxu0 0
        %218 = vmatpush1.bf16.msra.mxu0 %v208
        %219 = vmatprep.subr.bf16.mxu0 0
        %220 = vmatpush1.bf16.msra.mxu0 0
        %221 = vmatprep.subr.bf16.mxu0 0
        %222 = vmatpush1.bf16.msra.mxu0 0
        %223 = vmatprep.subr.bf16.mxu0 0
        %224 = vmatpush1.bf16.msra.mxu0 0
        %225 = vmatprep.subr.bf16.mxu0 0
        %226 = vmatpush1.bf16.msra.mxu0 0
        %227 = vmatprep.subr.bf16.mxu0 0
        %228 = vmatpush1.bf16.msra.mxu0 0
        %229 = vmatprep.subr.bf16.mxu0 0
        %230 = vmatpush1.bf16.msra.mxu0 0
        %231 = vmatprep.subr.bf16.mxu0 0
        %232 = vmatpush1.bf16.msra.mxu0 0
        %233 = vmatprep.subr.bf16.mxu0 0
        %234 = vmatpush1.bf16.msra.mxu0 0
        %235 = vmatprep.subr.bf16.mxu0 0
        %236 = vmatpush1.bf16.msra.mxu0 0
        %237 = vmatprep.subr.bf16.mxu0 0
        %238 = vmatpush1.bf16.msra.mxu0 0
        %239 = vmatprep.subr.bf16.mxu0 0
        %240 = vmatpush1.bf16.msra.mxu0 0
        %241 = vmatprep.subr.bf16.mxu0 0
        %242 = vmatpush1.bf16.msra.mxu0 0
        %243 = vmatprep.subr.bf16.mxu0 0
        %244 = vmatpush1.bf16.msra.mxu0 0
        %245 = vmatprep.subr.bf16.mxu0 0
        %246 = vmatpush1.bf16.msra.mxu0 0
        %247 = vmatprep.mubr.bf16.mxu0 0
        %248 = vmatmul.mubr.bf16.gmra.mrb[0].mxu0 %v213
        %v249 = vpop.f32.mrb[0].mxu0
        %v250 = vadd.f32 0.0, %v249
        %v251 = vpop.f32.mrb[0].mxu0
        %v252 = vpop.f32.mrb[0].mxu0
        %v253 = vpop.f32.mrb[0].mxu0
        %254 = vdwg.mxu0
        %v255 = vmul.f32 %v250, 0.35355338
        %v256 = vpack.c.bf16 %v255, %v255
        %v257 = vpack.c.bf16 %v250, %v250
        %259 = vrot.lane.b32.xlu0 %v257, 120
        %v260 = vpop.permute.xlu0 %259
        %vm261 = vcmask 64512
        %v263 = vsel %vm261, %v256, 0
        %v266 = vsel %vm261, %v260, 0
        %268 = vmatprep.subr.bf16.mxu0 0
        %269 = vmatpush1.bf16.xpose.msra.mxu0 %v266
        %270 = vmatprep.subr.bf16.mxu0 0
        %271 = vmatpush1.bf16.xpose.msra.mxu0 0
        %272 = vmatprep.subr.bf16.mxu0 0
        %273 = vmatpush1.bf16.xpose.msra.mxu0 0
        %274 = vmatprep.subr.bf16.mxu0 0
        %275 = vmatpush1.bf16.xpose.msra.mxu0 0
        %276 = vmatprep.subr.bf16.mxu0 0
        %277 = vmatpush1.bf16.xpose.msra.mxu0 0
        %278 = vmatprep.subr.bf16.mxu0 0
        %279 = vmatpush1.bf16.xpose.msra.mxu0 0
        %280 = vmatprep.subr.bf16.mxu0 0
        %281 = vmatpush1.bf16.xpose.msra.mxu0 0
        %282 = vmatprep.subr.bf16.mxu0 0
        %283 = vmatpush1.bf16.xpose.msra.mxu0 0
        %284 = vmatprep.subr.bf16.mxu0 0
        %285 = vmatpush1.bf16.xpose.msra.mxu0 0
        %286 = vmatprep.subr.bf16.mxu0 0
        %287 = vmatpush1.bf16.xpose.msra.mxu0 0
        %288 = vmatprep.subr.bf16.mxu0 0
        %289 = vmatpush1.bf16.xpose.msra.mxu0 0
        %290 = vmatprep.subr.bf16.mxu0 0
        %291 = vmatpush1.bf16.xpose.msra.mxu0 0
        %292 = vmatprep.subr.bf16.mxu0 0
        %293 = vmatpush1.bf16.xpose.msra.mxu0 0
        %294 = vmatprep.subr.bf16.mxu0 0
        %295 = vmatpush1.bf16.xpose.msra.mxu0 0
        %296 = vmatprep.subr.bf16.mxu0 0
        %297 = vmatpush1.bf16.xpose.msra.mxu0 0
        %298 = vmatprep.subr.bf16.mxu0 0
        %299 = vmatpush1.bf16.xpose.msra.mxu0 0
        %300 = vmatprep.mubr.bf16.mxu0 0
        %301 = vmatmul.mubr.bf16.gmra.mrb[0].mxu0 %v263
        %v302 = vpop.f32.mrb[0].mxu0
        %v303 = vadd.f32 0.0, %v302
        %v304 = vpop.f32.mrb[0].mxu0
        %v305 = vpop.f32.mrb[0].mxu0
        %v306 = vpop.f32.mrb[0].mxu0
        %307 = vdwg.mxu0
        %v308 = vsel %vm261, %v303, -inf
        %309 = vmax.xlane.f32.xlu0 %v308
        %v310 = vpop.xlane.xlu0 %309
        %v311 = vsub.f32 %v303, %v310
        %v312 = vmul.f32 %v311, 1.442695
        %v313 = vpow.pop %v312
        %v314 = vsel %vm261, %v313, 0.0
        %315 = vadd.xlane.f32.xlu0 %v314
        %v316 = vpop.xlane.xlu0 %315
        %v317 = vpack.c.bf16 %v313, %v313
        %318 = vrot.lane.b32.xlu0 %v257, 112
        %v319 = vpop.permute.xlu0 %318
        %v321 = vsel %vm261, %v317, 0
        %vm323 = vcmask 1043456
        %v325 = vsel %vm323, %v319, 0
        %327 = vmatprep.subr.bf16.mxu0 0
        %328 = vmatpush1.bf16.msra.mxu0 %v325
        %329 = vmatprep.subr.bf16.mxu0 0
        %330 = vmatpush1.bf16.msra.mxu0 0
        %331 = vmatprep.subr.bf16.mxu0 0
        %332 = vmatpush1.bf16.msra.mxu0 0
        %333 = vmatprep.subr.bf16.mxu0 0
        %334 = vmatpush1.bf16.msra.mxu0 0
        %335 = vmatprep.subr.bf16.mxu0 0
        %336 = vmatpush1.bf16.msra.mxu0 0
        %337 = vmatprep.subr.bf16.mxu0 0
        %338 = vmatpush1.bf16.msra.mxu0 0
        %339 = vmatprep.subr.bf16.mxu0 0
        %340 = vmatpush1.bf16.msra.mxu0 0
        %341 = vmatprep.subr.bf16.mxu0 0
        %342 = vmatpush1.bf16.msra.mxu0 0
        %343 = vmatprep.subr.bf16.mxu0 0
        %344 = vmatpush1.bf16.msra.mxu0 0
        %345 = vmatprep.subr.bf16.mxu0 0
        %346 = vmatpush1.bf16.msra.mxu0 0
        %347 = vmatprep.subr.bf16.mxu0 0
        %348 = vmatpush1.bf16.msra.mxu0 0
        %349 = vmatprep.subr.bf16.mxu0 0
        %350 = vmatpush1.bf16.msra.mxu0 0
        %351 = vmatprep.subr.bf16.mxu0 0
        %352 = vmatpush1.bf16.msra.mxu0 0
        %353 = vmatprep.subr.bf16.mxu0 0
        %354 = vmatpush1.bf16.msra.mxu0 0
        %355 = vmatprep.subr.bf16.mxu0 0
        %356 = vmatpush1.bf16.msra.mxu0 0
        %357 = vmatprep.subr.bf16.mxu0 0
        %358 = vmatpush1.bf16.msra.mxu0 0
        %359 = vmatprep.mubr.bf16.mxu0 0
        %360 = vmatmul.mubr.bf16.gmra.mrb[0].mxu0 %v321
        %v361 = vpop.f32.mrb[0].mxu0
        %v362 = vadd.f32 0.0, %v361
        %v363 = vpop.f32.mrb[0].mxu0
        %v364 = vpop.f32.mrb[0].mxu0
        %v365 = vpop.f32.mrb[0].mxu0
        %366 = vdwg.mxu0
        %v367 = vrcp.pop %v316
        %v368 = vmul.f32 %v362, %v367
        %v369 = vpack.c.bf16 %v368, %v368
        %vm370 = vcmask 60416
        %371 = vst.msk [vmem:[#allocation2] sm:$0xf] %vm370, %v369
        %s372 = scalar_lea.vmem %s1, 16
        %v373 = vld [vmem:[%s372] sm:$0xf]
        %v374 = vld [vmem:[%s372 + $0x4] sm:$0xf]
        %v375 = vld [vmem:[%s372 + $0x8] sm:$0xf]
        %v376 = vld [vmem:[%s372 + $0xc] sm:$0xf]
        %v381 = vunpack.c.l.b16 %v373
        %v382 = vunpack.c.l.b16 %v374
        %v383 = vunpack.c.l.b16 %v375
        %v384 = vunpack.c.l.b16 %v376
        %v385 = vpack.c.b16 %v382, %v381
        %v386 = vpack.c.b16 %v384, %v383
        %389 = vmatprep.subr.bf16.mxu0 0
        %390 = vmatpush1.bf16.msra.mxu0 %v385
        %391 = vmatprep.subr.bf16.mxu0 0
        %392 = vmatpush1.bf16.msra.mxu0 %v386
        %393 = vmatprep.subr.bf16.mxu0 0
        %394 = vmatpush1.bf16.msra.mxu0 0
        %395 = vmatprep.subr.bf16.mxu0 0
        %396 = vmatpush1.bf16.msra.mxu0 0
        %397 = vmatprep.subr.bf16.mxu0 0
        %398 = vmatpush1.bf16.msra.mxu0 0
        %399 = vmatprep.subr.bf16.mxu0 0
        %400 = vmatpush1.bf16.msra.mxu0 0
        %401 = vmatprep.subr.bf16.mxu0 0
        %402 = vmatpush1.bf16.msra.mxu0 0
        %403 = vmatprep.subr.bf16.mxu0 0
        %404 = vmatpush1.bf16.msra.mxu0 0
        %405 = vmatprep.subr.bf16.mxu0 0
        %406 = vmatpush1.bf16.msra.mxu0 0
        %407 = vmatprep.subr.bf16.mxu0 0
        %408 = vmatpush1.bf16.msra.mxu0 0
        %409 = vmatprep.subr.bf16.mxu0 0
        %410 = vmatpush1.bf16.msra.mxu0 0
        %411 = vmatprep.subr.bf16.mxu0 0
        %412 = vmatpush1.bf16.msra.mxu0 0
        %413 = vmatprep.subr.bf16.mxu0 0
        %414 = vmatpush1.bf16.msra.mxu0 0
        %415 = vmatprep.subr.bf16.mxu0 0
        %416 = vmatpush1.bf16.msra.mxu0 0
        %417 = vmatprep.subr.bf16.mxu0 0
        %418 = vmatpush1.bf16.msra.mxu0 0
        %419 = vmatprep.subr.bf16.mxu0 0
        %420 = vmatpush1.bf16.msra.mxu0 0
        %421 = vmatprep.mubr.bf16.mxu0 0
        %422 = vmatmul.mubr.bf16.gmra.mrb[0].mxu0 %v213
        %v423 = vpop.f32.mrb[0].mxu0
        %v424 = vadd.f32 0.0, %v423
        %v425 = vpop.f32.mrb[0].mxu0
        %v426 = vpop.f32.mrb[0].mxu0
        %v427 = vpop.f32.mrb[0].mxu0
        %428 = vdwg.mxu0
        %v429 = vmul.f32 %v424, 0.35355338
        %v430 = vpack.c.bf16 %v429, %v429
        %v431 = vpack.c.bf16 %v424, %v424
        %433 = vrot.lane.b32.xlu0 %v431, 120
        %v434 = vpop.permute.xlu0 %433
        %v436 = vsel %vm261, %v430, 0
        %v439 = vsel %vm261, %v434, 0
        %441 = vmatprep.subr.bf16.mxu0 0
        %442 = vmatpush1.bf16.xpose.msra.mxu0 %v439
        %443 = vmatprep.subr.bf16.mxu0 0
        %444 = vmatpush1.bf16.xpose.msra.mxu0 0
        %445 = vmatprep.subr.bf16.mxu0 0
        %446 = vmatpush1.bf16.xpose.msra.mxu0 0
        %447 = vmatprep.subr.bf16.mxu0 0
        %448 = vmatpush1.bf16.xpose.msra.mxu0 0
        %449 = vmatprep.subr.bf16.mxu0 0
        %450 = vmatpush1.bf16.xpose.msra.mxu0 0
        %451 = vmatprep.subr.bf16.mxu0 0
        %452 = vmatpush1.bf16.xpose.msra.mxu0 0
        %453 = vmatprep.subr.bf16.mxu0 0
        %454 = vmatpush1.bf16.xpose.msra.mxu0 0
        %455 = vmatprep.subr.bf16.mxu0 0
        %456 = vmatpush1.bf16.xpose.msra.mxu0 0
        %457 = vmatprep.subr.bf16.mxu0 0
        %458 = vmatpush1.bf16.xpose.msra.mxu0 0
        %459 = vmatprep.subr.bf16.mxu0 0
        %460 = vmatpush1.bf16.xpose.msra.mxu0 0
        %461 = vmatprep.subr.bf16.mxu0 0
        %462 = vmatpush1.bf16.xpose.msra.mxu0 0
        %463 = vmatprep.subr.bf16.mxu0 0
        %464 = vmatpush1.bf16.xpose.msra.mxu0 0
        %465 = vmatprep.subr.bf16.mxu0 0
        %466 = vmatpush1.bf16.xpose.msra.mxu0 0
        %467 = vmatprep.subr.bf16.mxu0 0
        %468 = vmatpush1.bf16.xpose.msra.mxu0 0
        %469 = vmatprep.subr.bf16.mxu0 0
        %470 = vmatpush1.bf16.xpose.msra.mxu0 0
        %471 = vmatprep.subr.bf16.mxu0 0
        %472 = vmatpush1.bf16.xpose.msra.mxu0 0
        %473 = vmatprep.mubr.bf16.mxu0 0
        %474 = vmatmul.mubr.bf16.gmra.mrb[0].mxu0 %v436
        %v475 = vpop.f32.mrb[0].mxu0
        %v476 = vadd.f32 0.0, %v475
        %v477 = vpop.f32.mrb[0].mxu0
        %v478 = vpop.f32.mrb[0].mxu0
        %v479 = vpop.f32.mrb[0].mxu0
        %480 = vdwg.mxu0
        %v481 = vsel %vm261, %v476, -inf
        %482 = vmax.xlane.f32.xlu0 %v481
        %v483 = vpop.xlane.xlu0 %482
        %v484 = vsub.f32 %v476, %v483
        %v485 = vmul.f32 %v484, 1.442695
        %v486 = vpow.pop %v485
        %v487 = vsel %vm261, %v486, 0.0
        %488 = vadd.xlane.f32.xlu0 %v487
        %v489 = vpop.xlane.xlu0 %488
        %v490 = vpack.c.bf16 %v486, %v486
        %491 = vrot.lane.b32.xlu0 %v431, 112
        %v492 = vpop.permute.xlu0 %491
        %v494 = vsel %vm261, %v490, 0
        %v497 = vsel %vm323, %v492, 0
        %499 = vmatprep.subr.bf16.mxu0 0
        %500 = vmatpush1.bf16.msra.mxu0 %v497
        %501 = vmatprep.subr.bf16.mxu0 0
        %502 = vmatpush1.bf16.msra.mxu0 0
        %503 = vmatprep.subr.bf16.mxu0 0
        %504 = vmatpush1.bf16.msra.mxu0 0
        %505 = vmatprep.subr.bf16.mxu0 0
        %506 = vmatpush1.bf16.msra.mxu0 0
        %507 = vmatprep.subr.bf16.mxu0 0
        %508 = vmatpush1.bf16.msra.mxu0 0
        %509 = vmatprep.subr.bf16.mxu0 0
        %510 = vmatpush1.bf16.msra.mxu0 0
        %511 = vmatprep.subr.bf16.mxu0 0
        %512 = vmatpush1.bf16.msra.mxu0 0
        %513 = vmatprep.subr.bf16.mxu0 0
        %514 = vmatpush1.bf16.msra.mxu0 0
        %515 = vmatprep.subr.bf16.mxu0 0
        %516 = vmatpush1.bf16.msra.mxu0 0
        %517 = vmatprep.subr.bf16.mxu0 0
        %518 = vmatpush1.bf16.msra.mxu0 0
        %519 = vmatprep.subr.bf16.mxu0 0
        %520 = vmatpush1.bf16.msra.mxu0 0
        %521 = vmatprep.subr.bf16.mxu0 0
        %522 = vmatpush1.bf16.msra.mxu0 0
        %523 = vmatprep.subr.bf16.mxu0 0
        %524 = vmatpush1.bf16.msra.mxu0 0
        %525 = vmatprep.subr.bf16.mxu0 0
        %526 = vmatpush1.bf16.msra.mxu0 0
        %527 = vmatprep.subr.bf16.mxu0 0
        %528 = vmatpush1.bf16.msra.mxu0 0
        %529 = vmatprep.subr.bf16.mxu0 0
        %530 = vmatpush1.bf16.msra.mxu0 0
        %531 = vmatprep.mubr.bf16.mxu0 0
        %532 = vmatmul.mubr.bf16.gmra.mrb[0].mxu0 %v494
        %v533 = vpop.f32.mrb[0].mxu0
        %v534 = vadd.f32 0.0, %v533
        %v535 = vpop.f32.mrb[0].mxu0
        %v536 = vpop.f32.mrb[0].mxu0
        %v537 = vpop.f32.mrb[0].mxu0
        %538 = vdwg.mxu0
        %v539 = vrcp.pop %v489
        %v540 = vmul.f32 %v534, %v539
        %v541 = vpack.c.bf16 %v540, %v540
        %v543 = vunpack.c.l.b16 %v541
        %v544 = vpack.c.b16 %v543, %v543
        %545 = vrot.lane.b32.xlu0 %v544, 8
        %v546 = vpop.permute.xlu0 %545
        %vm548 = vcmask 126016
        %549 = vst.msk [vmem:[#allocation2] sm:$0xf] %vm548, %v546
        %s550 = scalar_lea.vmem %s1, 32
        %v551 = vld [vmem:[%s550] sm:$0xf]
        %v552 = vld [vmem:[%s550 + $0x4] sm:$0xf]
        %v553 = vld [vmem:[%s550 + $0x8] sm:$0xf]
        %v554 = vld [vmem:[%s550 + $0xc] sm:$0xf]
        %v559 = vunpack.c.l.b16 %v551
        %v560 = vunpack.c.l.b16 %v552
        %v561 = vunpack.c.l.b16 %v553
        %v562 = vunpack.c.l.b16 %v554
        %v563 = vpack.c.b16 %v560, %v559
        %v564 = vpack.c.b16 %v562, %v561
        %567 = vmatprep.subr.bf16.mxu0 0
        %568 = vmatpush1.bf16.msra.mxu0 %v563
        %569 = vmatprep.subr.bf16.mxu0 0
        %570 = vmatpush1.bf16.msra.mxu0 %v564
        %571 = vmatprep.subr.bf16.mxu0 0
        %572 = vmatpush1.bf16.msra.mxu0 0
        %573 = vmatprep.subr.bf16.mxu0 0
        %574 = vmatpush1.bf16.msra.mxu0 0
        %575 = vmatprep.subr.bf16.mxu0 0
        %576 = vmatpush1.bf16.msra.mxu0 0
        %577 = vmatprep.subr.bf16.mxu0 0
        %578 = vmatpush1.bf16.msra.mxu0 0
        %579 = vmatprep.subr.bf16.mxu0 0
        %580 = vmatpush1.bf16.msra.mxu0 0
        %581 = vmatprep.subr.bf16.mxu0 0
        %582 = vmatpush1.bf16.msra.mxu0 0
        %583 = vmatprep.subr.bf16.mxu0 0
        %584 = vmatpush1.bf16.msra.mxu0 0
        %585 = vmatprep.subr.bf16.mxu0 0
        %586 = vmatpush1.bf16.msra.mxu0 0
        %587 = vmatprep.subr.bf16.mxu0 0
        %588 = vmatpush1.bf16.msra.mxu0 0
        %589 = vmatprep.subr.bf16.mxu0 0
        %590 = vmatpush1.bf16.msra.mxu0 0
        %591 = vmatprep.subr.bf16.mxu0 0
        %592 = vmatpush1.bf16.msra.mxu0 0
        %593 = vmatprep.subr.bf16.mxu0 0
        %594 = vmatpush1.bf16.msra.mxu0 0
        %595 = vmatprep.subr.bf16.mxu0 0
        %596 = vmatpush1.bf16.msra.mxu0 0
        %597 = vmatprep.subr.bf16.mxu0 0
        %598 = vmatpush1.bf16.msra.mxu0 0
        %599 = vmatprep.mubr.bf16.mxu0 0
        %600 = vmatmul.mubr.bf16.gmra.mrb[0].mxu0 %v213
        %v601 = vpop.f32.mrb[0].mxu0
        %v602 = vadd.f32 0.0, %v601
        %v603 = vpop.f32.mrb[0].mxu0
        %v604 = vpop.f32.mrb[0].mxu0
        %v605 = vpop.f32.mrb[0].mxu0
        %606 = vdwg.mxu0
        %v607 = vmul.f32 %v602, 0.35355338
        %v608 = vpack.c.bf16 %v607, %v607
        %v609 = vpack.c.bf16 %v602, %v602
        %611 = vrot.lane.b32.xlu0 %v609, 120
        %v612 = vpop.permute.xlu0 %611
        %v614 = vsel %vm261, %v608, 0
        %v617 = vsel %vm261, %v612, 0
        %619 = vmatprep.subr.bf16.mxu0 0
        %620 = vmatpush1.bf16.xpose.msra.mxu0 %v617
        %621 = vmatprep.subr.bf16.mxu0 0
        %622 = vmatpush1.bf16.xpose.msra.mxu0 0
        %623 = vmatprep.subr.bf16.mxu0 0
        %624 = vmatpush1.bf16.xpose.msra.mxu0 0
        %625 = vmatprep.subr.bf16.mxu0 0
        %626 = vmatpush1.bf16.xpose.msra.mxu0 0
        %627 = vmatprep.subr.bf16.mxu0 0
        %628 = vmatpush1.bf16.xpose.msra.mxu0 0
        %629 = vmatprep.subr.bf16.mxu0 0
        %630 = vmatpush1.bf16.xpose.msra.mxu0 0
        %631 = vmatprep.subr.bf16.mxu0 0
        %632 = vmatpush1.bf16.xpose.msra.mxu0 0
        %633 = vmatprep.subr.bf16.mxu0 0
        %634 = vmatpush1.bf16.xpose.msra.mxu0 0
        %635 = vmatprep.subr.bf16.mxu0 0
        %636 = vmatpush1.bf16.xpose.msra.mxu0 0
        %637 = vmatprep.subr.bf16.mxu0 0
        %638 = vmatpush1.bf16.xpose.msra.mxu0 0
        %639 = vmatprep.subr.bf16.mxu0 0
        %640 = vmatpush1.bf16.xpose.msra.mxu0 0
        %641 = vmatprep.subr.bf16.mxu0 0
        %642 = vmatpush1.bf16.xpose.msra.mxu0 0
        %643 = vmatprep.subr.bf16.mxu0 0
        %644 = vmatpush1.bf16.xpose.msra.mxu0 0
        %645 = vmatprep.subr.bf16.mxu0 0
        %646 = vmatpush1.bf16.xpose.msra.mxu0 0
        %647 = vmatprep.subr.bf16.mxu0 0
        %648 = vmatpush1.bf16.xpose.msra.mxu0 0
        %649 = vmatprep.subr.bf16.mxu0 0
        %650 = vmatpush1.bf16.xpose.msra.mxu0 0
        %651 = vmatprep.mubr.bf16.mxu0 0
        %652 = vmatmul.mubr.bf16.gmra.mrb[0].mxu0 %v614
        %v653 = vpop.f32.mrb[0].mxu0
        %v654 = vadd.f32 0.0, %v653
        %v655 = vpop.f32.mrb[0].mxu0
        %v656 = vpop.f32.mrb[0].mxu0
        %v657 = vpop.f32.mrb[0].mxu0
        %658 = vdwg.mxu0
        %v659 = vsel %vm261, %v654, -inf
        %660 = vmax.xlane.f32.xlu0 %v659
        %v661 = vpop.xlane.xlu0 %660
        %v662 = vsub.f32 %v654, %v661
        %v663 = vmul.f32 %v662, 1.442695
        %v664 = vpow.pop %v663
        %v665 = vsel %vm261, %v664, 0.0
        %666 = vadd.xlane.f32.xlu0 %v665
        %v667 = vpop.xlane.xlu0 %666
        %v668 = vpack.c.bf16 %v664, %v664
        %669 = vrot.lane.b32.xlu0 %v609, 112
        %v670 = vpop.permute.xlu0 %669
        %v672 = vsel %vm261, %v668, 0
        %v675 = vsel %vm323, %v670, 0
        %677 = vmatprep.subr.bf16.mxu0 0
        %678 = vmatpush1.bf16.msra.mxu0 %v675
        %679 = vmatprep.subr.bf16.mxu0 0
        %680 = vmatpush1.bf16.msra.mxu0 0
        %681 = vmatprep.subr.bf16.mxu0 0
        %682 = vmatpush1.bf16.msra.mxu0 0
        %683 = vmatprep.subr.bf16.mxu0 0
        %684 = vmatpush1.bf16.msra.mxu0 0
        %685 = vmatprep.subr.bf16.mxu0 0
        %686 = vmatpush1.bf16.msra.mxu0 0
        %687 = vmatprep.subr.bf16.mxu0 0
        %688 = vmatpush1.bf16.msra.mxu0 0
        %689 = vmatprep.subr.bf16.mxu0 0
        %690 = vmatpush1.bf16.msra.mxu0 0
        %691 = vmatprep.subr.bf16.mxu0 0
        %692 = vmatpush1.bf16.msra.mxu0 0
        %693 = vmatprep.subr.bf16.mxu0 0
        %694 = vmatpush1.bf16.msra.mxu0 0
        %695 = vmatprep.subr.bf16.mxu0 0
        %696 = vmatpush1.bf16.msra.mxu0 0
        %697 = vmatprep.subr.bf16.mxu0 0
        %698 = vmatpush1.bf16.msra.mxu0 0
        %699 = vmatprep.subr.bf16.mxu0 0
        %700 = vmatpush1.bf16.msra.mxu0 0
        %701 = vmatprep.subr.bf16.mxu0 0
        %702 = vmatpush1.bf16.msra.mxu0 0
        %703 = vmatprep.subr.bf16.mxu0 0
        %704 = vmatpush1.bf16.msra.mxu0 0
        %705 = vmatprep.subr.bf16.mxu0 0
        %706 = vmatpush1.bf16.msra.mxu0 0
        %707 = vmatprep.subr.bf16.mxu0 0
        %708 = vmatpush1.bf16.msra.mxu0 0
        %709 = vmatprep.mubr.bf16.mxu0 0
        %710 = vmatmul.mubr.bf16.gmra.mrb[0].mxu0 %v672
        %v711 = vpop.f32.mrb[0].mxu0
        %v712 = vadd.f32 0.0, %v711
        %v713 = vpop.f32.mrb[0].mxu0
        %v714 = vpop.f32.mrb[0].mxu0
        %v715 = vpop.f32.mrb[0].mxu0
        %716 = vdwg.mxu0
        %v717 = vrcp.pop %v667
        %v718 = vmul.f32 %v712, %v717
        %v719 = vpack.c.bf16 %v718, %v718
        %v721 = vunpack.c.l.b16 %v719
        %v722 = vpack.c.b16 %v721, %v721
        %723 = vrot.lane.b32.xlu0 %v722, 16
        %v724 = vpop.permute.xlu0 %723
        %vm726 = vcmask 191616
        %727 = vst.msk [vmem:[#allocation2] sm:$0xf] %vm726, %v724
        %s728 = scalar_lea.vmem %s1, 48
        %v729 = vld [vmem:[%s728] sm:$0xf]
        %v730 = vld [vmem:[%s728 + $0x4] sm:$0xf]
        %v731 = vld [vmem:[%s728 + $0x8] sm:$0xf]
        %v732 = vld [vmem:[%s728 + $0xc] sm:$0xf]
        %v737 = vunpack.c.l.b16 %v729
        %v738 = vunpack.c.l.b16 %v730
        %v739 = vunpack.c.l.b16 %v731
        %v740 = vunpack.c.l.b16 %v732
        %v741 = vpack.c.b16 %v738, %v737
        %v742 = vpack.c.b16 %v740, %v739
        %745 = vmatprep.subr.bf16.mxu0 0
        %746 = vmatpush1.bf16.msra.mxu0 %v741
        %747 = vmatprep.subr.bf16.mxu0 0
        %748 = vmatpush1.bf16.msra.mxu0 %v742
        %749 = vmatprep.subr.bf16.mxu0 0
        %750 = vmatpush1.bf16.msra.mxu0 0
        %751 = vmatprep.subr.bf16.mxu0 0
        %752 = vmatpush1.bf16.msra.mxu0 0
        %753 = vmatprep.subr.bf16.mxu0 0
        %754 = vmatpush1.bf16.msra.mxu0 0
        %755 = vmatprep.subr.bf16.mxu0 0
        %756 = vmatpush1.bf16.msra.mxu0 0
        %757 = vmatprep.subr.bf16.mxu0 0
        %758 = vmatpush1.bf16.msra.mxu0 0
        %759 = vmatprep.subr.bf16.mxu0 0
        %760 = vmatpush1.bf16.msra.mxu0 0
        %761 = vmatprep.subr.bf16.mxu0 0
        %762 = vmatpush1.bf16.msra.mxu0 0
        %763 = vmatprep.subr.bf16.mxu0 0
        %764 = vmatpush1.bf16.msra.mxu0 0
        %765 = vmatprep.subr.bf16.mxu0 0
        %766 = vmatpush1.bf16.msra.mxu0 0
        %767 = vmatprep.subr.bf16.mxu0 0
        %768 = vmatpush1.bf16.msra.mxu0 0
        %769 = vmatprep.subr.bf16.mxu0 0
        %770 = vmatpush1.bf16.msra.mxu0 0
        %771 = vmatprep.subr.bf16.mxu0 0
        %772 = vmatpush1.bf16.msra.mxu0 0
        %773 = vmatprep.subr.bf16.mxu0 0
        %774 = vmatpush1.bf16.msra.mxu0 0
        %775 = vmatprep.subr.bf16.mxu0 0
        %776 = vmatpush1.bf16.msra.mxu0 0
        %777 = vmatprep.mubr.bf16.mxu0 0
        %778 = vmatmul.mubr.bf16.gmra.mrb[0].mxu0 %v213
        %v779 = vpop.f32.mrb[0].mxu0
        %v780 = vadd.f32 0.0, %v779
        %v781 = vpop.f32.mrb[0].mxu0
        %v782 = vpop.f32.mrb[0].mxu0
        %v783 = vpop.f32.mrb[0].mxu0
        %784 = vdwg.mxu0
        %v785 = vmul.f32 %v780, 0.35355338
        %v786 = vpack.c.bf16 %v785, %v785
        %v787 = vpack.c.bf16 %v780, %v780
        %789 = vrot.lane.b32.xlu0 %v787, 120
        %v790 = vpop.permute.xlu0 %789
        %v792 = vsel %vm261, %v786, 0
        %v795 = vsel %vm261, %v790, 0
        %797 = vmatprep.subr.bf16.mxu0 0
        %798 = vmatpush1.bf16.xpose.msra.mxu0 %v795
        %799 = vmatprep.subr.bf16.mxu0 0
        %800 = vmatpush1.bf16.xpose.msra.mxu0 0
        %801 = vmatprep.subr.bf16.mxu0 0
        %802 = vmatpush1.bf16.xpose.msra.mxu0 0
        %803 = vmatprep.subr.bf16.mxu0 0
        %804 = vmatpush1.bf16.xpose.msra.mxu0 0
        %805 = vmatprep.subr.bf16.mxu0 0
        %806 = vmatpush1.bf16.xpose.msra.mxu0 0
        %807 = vmatprep.subr.bf16.mxu0 0
        %808 = vmatpush1.bf16.xpose.msra.mxu0 0
        %809 = vmatprep.subr.bf16.mxu0 0
        %810 = vmatpush1.bf16.xpose.msra.mxu0 0
        %811 = vmatprep.subr.bf16.mxu0 0
        %812 = vmatpush1.bf16.xpose.msra.mxu0 0
        %813 = vmatprep.subr.bf16.mxu0 0
        %814 = vmatpush1.bf16.xpose.msra.mxu0 0
        %815 = vmatprep.subr.bf16.mxu0 0
        %816 = vmatpush1.bf16.xpose.msra.mxu0 0
        %817 = vmatprep.subr.bf16.mxu0 0
        %818 = vmatpush1.bf16.xpose.msra.mxu0 0
        %819 = vmatprep.subr.bf16.mxu0 0
        %820 = vmatpush1.bf16.xpose.msra.mxu0 0
        %821 = vmatprep.subr.bf16.mxu0 0
        %822 = vmatpush1.bf16.xpose.msra.mxu0 0
        %823 = vmatprep.subr.bf16.mxu0 0
        %824 = vmatpush1.bf16.xpose.msra.mxu0 0
        %825 = vmatprep.subr.bf16.mxu0 0
        %826 = vmatpush1.bf16.xpose.msra.mxu0 0
        %827 = vmatprep.subr.bf16.mxu0 0
        %828 = vmatpush1.bf16.xpose.msra.mxu0 0
        %829 = vmatprep.mubr.bf16.mxu0 0
        %830 = vmatmul.mubr.bf16.gmra.mrb[0].mxu0 %v792
        %v831 = vpop.f32.mrb[0].mxu0
        %v832 = vadd.f32 0.0, %v831
        %v833 = vpop.f32.mrb[0].mxu0
        %v834 = vpop.f32.mrb[0].mxu0
        %v835 = vpop.f32.mrb[0].mxu0
        %836 = vdwg.mxu0
        %v837 = vsel %vm261, %v832, -inf
        %838 = vmax.xlane.f32.xlu0 %v837
        %v839 = vpop.xlane.xlu0 %838
        %v840 = vsub.f32 %v832, %v839
        %v841 = vmul.f32 %v840, 1.442695
        %v842 = vpow.pop %v841
        %v843 = vsel %vm261, %v842, 0.0
        %844 = vadd.xlane.f32.xlu0 %v843
        %v845 = vpop.xlane.xlu0 %844
        %v846 = vpack.c.bf16 %v842, %v842
        %847 = vrot.lane.b32.xlu0 %v787, 112
        %v848 = vpop.permute.xlu0 %847
        %v850 = vsel %vm261, %v846, 0
        %v853 = vsel %vm323, %v848, 0
        %855 = vmatprep.subr.bf16.mxu0 0
        %856 = vmatpush1.bf16.msra.mxu0 %v853
        %857 = vmatprep.subr.bf16.mxu0 0
        %858 = vmatpush1.bf16.msra.mxu0 0
        %859 = vmatprep.subr.bf16.mxu0 0
        %860 = vmatpush1.bf16.msra.mxu0 0
        %861 = vmatprep.subr.bf16.mxu0 0
        %862 = vmatpush1.bf16.msra.mxu0 0
        %863 = vmatprep.subr.bf16.mxu0 0
        %864 = vmatpush1.bf16.msra.mxu0 0
        %865 = vmatprep.subr.bf16.mxu0 0
        %866 = vmatpush1.bf16.msra.mxu0 0
        %867 = vmatprep.subr.bf16.mxu0 0
        %868 = vmatpush1.bf16.msra.mxu0 0
        %869 = vmatprep.subr.bf16.mxu0 0
        %870 = vmatpush1.bf16.msra.mxu0 0
        %871 = vmatprep.subr.bf16.mxu0 0
        %872 = vmatpush1.bf16.msra.mxu0 0
        %873 = vmatprep.subr.bf16.mxu0 0
        %874 = vmatpush1.bf16.msra.mxu0 0
        %875 = vmatprep.subr.bf16.mxu0 0
        %876 = vmatpush1.bf16.msra.mxu0 0
        %877 = vmatprep.subr.bf16.mxu0 0
        %878 = vmatpush1.bf16.msra.mxu0 0
        %879 = vmatprep.subr.bf16.mxu0 0
        %880 = vmatpush1.bf16.msra.mxu0 0
        %881 = vmatprep.subr.bf16.mxu0 0
        %882 = vmatpush1.bf16.msra.mxu0 0
        %883 = vmatprep.subr.bf16.mxu0 0
        %884 = vmatpush1.bf16.msra.mxu0 0
        %885 = vmatprep.subr.bf16.mxu0 0
        %886 = vmatpush1.bf16.msra.mxu0 0
        %887 = vmatprep.mubr.bf16.mxu0 0
        %888 = vmatmul.mubr.bf16.gmra.mrb[0].mxu0 %v850
        %v889 = vpop.f32.mrb[0].mxu0
        %v890 = vadd.f32 0.0, %v889
        %v891 = vpop.f32.mrb[0].mxu0
        %v892 = vpop.f32.mrb[0].mxu0
        %v893 = vpop.f32.mrb[0].mxu0
        %894 = vdwg.mxu0
        %v895 = vrcp.pop %v845
        %v896 = vmul.f32 %v890, %v895
        %v897 = vpack.c.bf16 %v896, %v896
        %v899 = vunpack.c.l.b16 %v897
        %v900 = vpack.c.b16 %v899, %v899
        %901 = vrot.lane.b32.xlu0 %v900, 24
        %v902 = vpop.permute.xlu0 %901
        %vm904 = vcmask 257216
        %905 = vst.msk [vmem:[#allocation2] sm:$0xf] %vm904, %v902
        %v906 = vld [vmem:[#allocation2] sm:$0xf]
        %v907 = vld [vmem:[%s2] sm:$0xf]
        %v908 = vld [vmem:[%s2 + $0x4] sm:$0xf]
        %v909 = vld [vmem:[%s2 + $0x8] sm:$0xf]
        %v910 = vld [vmem:[%s2 + $0xc] sm:$0xf]
        %v911 = vld [vmem:[%s3] sm:$0x1]
        %v913 = vlaneseq
        %v914 = vshrl.u32 %v913, 7
        %v915 = vsub.s32 0, %v914
        %v916 = vrot.slane %v911, %v915
        %v922 = vunpack.c.l.b16 %v907
        %v923 = vunpack.c.l.b16 %v908
        %v924 = vunpack.c.l.b16 %v909
        %v925 = vunpack.c.l.b16 %v910
        %v926 = vpack.c.b16 %v923, %v922
        %v927 = vpack.c.b16 %v925, %v924
        %v931 = vsel %vm211, %v906, 0
        %933 = vmatprep.subr.bf16.mxu0 0
        %934 = vmatpush1.bf16.msra.mxu0 %v926
        %935 = vmatprep.subr.bf16.mxu0 0
        %936 = vmatpush1.bf16.msra.mxu0 %v927
        %937 = vmatprep.subr.bf16.mxu0 0
        %938 = vmatpush1.bf16.msra.mxu0 0
        %939 = vmatprep.subr.bf16.mxu0 0
        %940 = vmatpush1.bf16.msra.mxu0 0
        %941 = vmatprep.subr.bf16.mxu0 0
        %942 = vmatpush1.bf16.msra.mxu0 0
        %943 = vmatprep.subr.bf16.mxu0 0
        %944 = vmatpush1.bf16.msra.mxu0 0
        %945 = vmatprep.subr.bf16.mxu0 0
        %946 = vmatpush1.bf16.msra.mxu0 0
        %947 = vmatprep.subr.bf16.mxu0 0
        %948 = vmatpush1.bf16.msra.mxu0 0
        %949 = vmatprep.subr.bf16.mxu0 0
        %950 = vmatpush1.bf16.msra.mxu0 0
        %951 = vmatprep.subr.bf16.mxu0 0
        %952 = vmatpush1.bf16.msra.mxu0 0
        %953 = vmatprep.subr.bf16.mxu0 0
        %954 = vmatpush1.bf16.msra.mxu0 0
        %955 = vmatprep.subr.bf16.mxu0 0
        %956 = vmatpush1.bf16.msra.mxu0 0
        %957 = vmatprep.subr.bf16.mxu0 0
        %958 = vmatpush1.bf16.msra.mxu0 0
        %959 = vmatprep.subr.bf16.mxu0 0
        %960 = vmatpush1.bf16.msra.mxu0 0
        %961 = vmatprep.subr.bf16.mxu0 0
        %962 = vmatpush1.bf16.msra.mxu0 0
        %963 = vmatprep.subr.bf16.mxu0 0
        %964 = vmatpush1.bf16.msra.mxu0 0
        %965 = vmatprep.mubr.bf16.mxu0 0
        %966 = vmatmul.mubr.bf16.gmra.mrb[0].mxu0 %v931
        %v967 = vpop.f32.mrb[0].mxu0
        %v968 = vadd.f32 %v916, %v967
        %v969 = vpop.f32.mrb[0].mxu0
        %v970 = vpop.f32.mrb[0].mxu0
        %v971 = vpop.f32.mrb[0].mxu0
        %972 = vdwg.mxu0
        %973 = vst.msk [vmem:[%s188] sm:$0xff] %vm211, %v968
        %s974 = sand.u32 %s115, 1
        %s975 = scalar_lea.sflag [#allocation4], %s974
        %s976 = sand.u32 %s115, 1
        %s977 = smul.addr %s976, 8
        %s978 = scalar_lea.vmem [#allocation3], %s977
        // Predicated region
        $region37: #{tpu_custom_call.1} parent=35 // pred_check
          %p979 = pneg %p125
        $region38: #{tpu_custom_call.1} parent=35 // pred_check_branch
          %981 = sbr.rel (%p979) target = $region40
        $region39: #{tpu_custom_call.1} parent=35 // pred_region
          %s983 = ssub.s32 128, 128
          %984 = vsyncadd %s975, %s983
          %s985 = smul.addr %s18, 128
          %s986 = scalar_lea.hbm %s4, %s985
          %s988 = sshll.u32 %s978, 4
          %s989 = int_to_ptr.vmem [resolvable:$true] %s988
          %991 = dma.vmem_to_hbm [thread:$0]  %s989, 128, %s986, %s975
        $region40: #{tpu_custom_call.1} parent=35 // pred_fallthru
          _
      $region36: #{tpu_custom_call.1} parent=5 // pred_fallthru
        _
      %p992 = scmp.le.s32.totalorder 2, %s13
      // Predicated region
      $region41: #{tpu_custom_call.1} parent=5 // pred_check
        %p993 = pneg %p992
      $region42: #{tpu_custom_call.1} parent=5 // pred_check_branch
        %995 = sbr.rel (%p993) target = $region44
      $region43: #{tpu_custom_call.1} parent=5 // pred_region
        %s996 = ssub.s32 %s13, 2
        // Predicated region
        $region45: #{tpu_custom_call.1} parent=43 // pred_check
          %p997 = pneg %p131
        $region46: #{tpu_custom_call.1} parent=43 // pred_check_branch
          %999 = sbr.rel (%p997) target = $region48
        $region47: #{tpu_custom_call.1} parent=43 // pred_region
          %s1000 = sand.u32 %s116, 1
          %s1001 = scalar_lea.sflag [#allocation4], %s1000
          %s1002 = sand.u32 %s116, 1
          %s1003 = smul.addr %s1002, 8
          %s1004 = scalar_lea.vmem [#allocation3], %s1003
          %1005 = dma.done %s1001, 128
        $region48: #{tpu_custom_call.1} parent=43 // pred_fallthru
          _
      $region44: #{tpu_custom_call.1} parent=5 // pred_fallthru
        _
    $region6: #{tpu_custom_call.1} parent=1 // loop_footer
      %s17 = sadd.s32 1, %s13
    $region7: #{tpu_custom_call.1} parent=1 // loop_footer_branch
      %12 = sbr.rel target = $region3
    $region8: #{tpu_custom_call.1} parent=1 // loop_exit
      _
    %1006 = vsyncpa [#allocation4], 1
    %s1007 = scalar_lea.sflag [#allocation4], 1
    %1008 = vsyncpa %s1007, 1

</llo_original>
